<compile_context>
chip_gen: v7x
topology: tpu7x:2x2x1
jax: 0.10.0
libtpu: 0.0.40
codegen_flags: <defaults>
</compile_context>

<pallas_src>
import jax
import jax.numpy as jnp
from jax.experimental import pallas as pl
from jax.experimental.pallas import tpu as pltpu


def _hbm_copy_kernel(x_hbm, o_hbm, sem):
    # Single HBM -> HBM DMA of the whole array; no VMEM staging, no vector ops.
    cp = pltpu.make_async_copy(x_hbm, o_hbm, sem)
    cp.start()
    cp.wait()


def _lane_dense_view(total: int):
    """Pick the widest lane-dense width (multiple of 128) dividing `total`."""
    for w in (8192, 4096, 2048, 1024, 512, 256, 128):
        if total % w == 0:
            return total // w, w
    return None


def _pallas_identity(x: jax.Array) -> jax.Array:
    """Bit-exact identity of `x` via a single HBM->HBM Pallas DMA."""
    orig_shape = x.shape
    total = 1
    for d in orig_shape:
        total *= d

    dims = _lane_dense_view(total)
    if dims is not None:
        # Metadata-only reshape of a contiguous array: widest lane-dense slab
        # gives the largest, fully dense DMA descriptors.
        x_view = x.reshape(dims)
    else:
        # Not 128-divisible: DMA the original shape directly — no pad pass.
        x_view = x

    y = pl.pallas_call(
        _hbm_copy_kernel,
        out_shape=jax.ShapeDtypeStruct(x_view.shape, x_view.dtype),
        in_specs=[pl.BlockSpec(memory_space=pl.ANY)],   # raw HBM ref, no auto-DMA
        out_specs=pl.BlockSpec(memory_space=pl.ANY),    # raw HBM ref, no auto-DMA
        scratch_shapes=[pltpu.SemaphoreType.DMA],       # completion semaphore
    )(x_view)

    return y.reshape(orig_shape)


class ROINetPallas:
    """JAX/Pallas mirror of the (stub) PyTorch ROINet module."""

    def __init__(self, in_ch: int, out_ch: int):
        # Reference __init__ registers no parameters; nothing to initialize.
        self.in_ch = in_ch
        self.out_ch = out_ch

    def __call__(self, x: jax.Array):
        return self.forward(x)

    def forward(self, x: jax.Array):
        # Reference forward() is `pass` -> returns None. No compute, no sync,
        # no HBM traffic.
        return None


if __name__ == "__main__":
    key = jax.random.PRNGKey(0)
    # Small NCHW input consistent with a conv-style net: batch=2, channels=4, 16x16.
    x = jax.random.normal(key, (2, 4, 16, 16), dtype=jnp.float32)

    # 1) Module semantics: forward returns None, exactly like the PyTorch stub.
    net = ROINetPallas(in_ch=4, out_ch=4)
    out = net(x)
    assert out is None, "ROINet.forward must return None (reference is a stub)."

    # 2) Standalone Pallas pipeline exercise: single HBM->HBM DMA identity copy.
    y = jax.block_until_ready(_pallas_identity(x))
    assert y.shape == x.shape and y.dtype == x.dtype
    assert jnp.array_equal(y, x), "Pallas identity copy mismatch."

    print("KERNEL_OK")
</pallas_src>

<mosaic_0001>
module attributes {stable_mosaic.version = 11 : i64} {
  func.func @_hbm_copy_kernel(%arg0: memref<1x2048xf32, #tpu.memory_space<any>>, %arg1: memref<1x2048xf32, #tpu.memory_space<any>>, %arg2: memref<!tpu.dma_semaphore, #tpu.memory_space<semaphore_mem>>) attributes {dimension_semantics = [], scalar_prefetch = 0 : i64, scratch_operands = 1 : i64, tpu.core_type = #tpu.core_type<tc>} {
    tpu.enqueue_dma source(%arg0 : memref<1x2048xf32, #tpu.memory_space<any>>) target(%arg1 : memref<1x2048xf32, #tpu.memory_space<any>>) target_semaphore(%arg2 : memref<!tpu.dma_semaphore, #tpu.memory_space<semaphore_mem>>)
    tpu.wait_dma2 semaphore(%arg2 : memref<!tpu.dma_semaphore, #tpu.memory_space<semaphore_mem>>) src(%arg0 : memref<1x2048xf32, #tpu.memory_space<any>>) dst(%arg1 : memref<1x2048xf32, #tpu.memory_space<any>>)
    return
  }
}

</mosaic_0001>

<llo_original>
// kernel: tpu_custom_call.1
$region0: #{tpu_custom_call.1}
  #allocation0 [shape = 'u32[]', space=smem, size = 0x4, offset = 0x4, fixed_abs, tag = 'smem constant byte address 0x4 - core index']
  #allocation1 [shape = 'u32[144,128]{1,0:T(1,128)}', space=vmem, size = 0x12000, scoped, tag = 'internal scratch']
  #allocation2 [shape = 's32[1]{0}', space=sflag, size = 0x4, scoped, tag = 'scratch operand']
  #allocation3 [shape = 's32[]', space=sflag, size = 0x4, offset = 0, fixed_abs, tag = 'sflag constant byte address 0x0 - dummy sync flag']
  #allocation4 [shape = 'u32[0]{0}', space=smem, size = 0, offset = 0, fixed_abs, tag = 'smem constant byte address 0x0 - null']
  %s0 = inlined_call_operand.hbm [shape: f32[1,2048], index: 0, kind: input, shape index: {}]
  %s1 = inlined_call_operand.hbm [shape: f32[1,2048], index: 1, kind: output, shape index: {}]
  %s2 = sld [smem:[#allocation0]]
  $region2: #{tpu_custom_call.1} parent=0
    _
  %s4 = ssub.s32 1, %s2
  %s5 = scalar_select 0, %s4, %s2
  %s7 = sshll.u32 1, 14
  %s8 = sxor.u32 4294967295, %s7
  %s11 = sshll.u32 3, 24
  %s12 = sxor.u32 4294967295, %s11
  %s13 = sand.u32 0, %s12
  %s15 = sor.u32 %s13, 0
  %18 = dma.general %s0, 256, %s1, [#allocation2], [#allocation3], [#allocation4], %s15, 0
  %s19 = smul.u32 1, 16
  %s20 = sshll.u32 %s19, 4
  %21 = dma.done [#allocation2], %s20
  %22 = vsyncmov [#allocation2]
  %s23 = vpop.sfrf %22
  %p24 = scmp.eq.s32.totalorder %s23, 0
  %p25 = pneg %p24
  %27 = shalt.err (%p25)

</llo_original>
